<compile_context>
chip_gen: v7x
topology: tpu7x:2x2x1
jax: 0.10.0
libtpu: 0.0.40
codegen_flags: <defaults>
</compile_context>

<pallas_src>
import jax
import jax.numpy as jnp
from jax.experimental import pallas as pl
from jax.experimental.pallas import tpu as pltpu


def _copy_kernel(x_ref, o_ref):
    # The reshape itself is pure metadata; the kernel is just the data
    # movement HBM -> VMEM -> HBM for the materialized-copy case.
    o_ref[...] = x_ref[...]


def _sublane_multiple(dtype):
    # Packed sublanes: f32 -> 8, bf16/f16 -> 16, int8/fp8 -> 32.
    itemsize = jnp.dtype(dtype).itemsize
    return max(8, 32 // max(1, itemsize))


def pallas_reshape(x, target_shape, *, materialize=True,
                   target_block_bytes=2 << 20):
    """Equivalent of torch `x.view((x.size(0),) + target_shape)`.

    materialize=False  -> metadata-only reshape (recommended when the
                          surrounding graph does not need a fresh buffer).
    materialize=True   -> element stream is copied through a Pallas kernel
                          tuned as a streaming HBM copy, then re-viewed.
    """
    batch = x.shape[0]
    out_shape = (batch,) + tuple(int(d) for d in target_shape)
    total = int(x.size)

    prod = 1
    for d in out_shape:
        prod *= d
    if prod != total:
        raise ValueError(f"cannot view {x.shape} as {out_shape}")

    if not materialize:
        # Zero-cost path: contiguous row-major view is free in XLA.
        return x.reshape(out_shape)

    itemsize = jnp.dtype(x.dtype).itemsize
    sub = _sublane_multiple(x.dtype)
    flat = x.reshape(-1)

    # Pick a lane-dense last dim (large multiple of 128), preferring a
    # factorization that needs no padding at all.
    lanes = None
    for cand in (4096, 2048, 1024, 512, 256, 128):
        if total % cand == 0 and (total // cand) % sub == 0:
            lanes = cand
            break
    if lanes is None:
        lanes = min(1024, 128 * max(1, total // 128))

    rows = pl.cdiv(total, lanes)

    # Block rows: big enough to amortize per-step pipeline overhead, small
    # enough that (in + out) x 2 double-buffers stay inside the default
    # 32 MiB scoped VMEM limit on every generation (incl. v7x's 64 MiB VMEM).
    block_rows = max(sub, (target_block_bytes // (lanes * itemsize)) // sub * sub)
    block_rows = min(block_rows, pl.cdiv(rows, sub) * sub)

    grid_rows = pl.cdiv(rows, block_rows)
    rows_padded = grid_rows * block_rows
    padded_total = rows_padded * lanes

    if padded_total != total:
        # Tail handling: pad in the wrapper, slice after the copy.
        flat = jnp.pad(flat, (0, padded_total - total))
    flat2d = flat.reshape(rows_padded, lanes)

    copied = pl.pallas_call(
        _copy_kernel,
        out_shape=jax.ShapeDtypeStruct((rows_padded, lanes), x.dtype),
        grid_spec=pltpu.PrefetchScalarGridSpec(
            num_scalar_prefetch=0,
            grid=(grid_rows,),
            in_specs=[pl.BlockSpec((block_rows, lanes), lambda i: (i, 0))],
            out_specs=pl.BlockSpec((block_rows, lanes), lambda i: (i, 0)),
        ),
        compiler_params=pltpu.CompilerParams(
            # "parallel" lets v7x shard grid steps across its 2 TensorCores;
            # harmless on single-TC v5e/v6e.
            dimension_semantics=("parallel",),
        ),
    )(flat2d)

    flat_out = copied.reshape(-1)
    if padded_total != total:
        flat_out = flat_out[:total]
    return flat_out.reshape(out_shape)


if __name__ == "__main__":
    key = jax.random.PRNGKey(0)

    # Example matching the module usage: Reshape(4, 256) applied to an
    # NCHW activation of shape (2, 4, 16, 16) -> (2, 4, 256).
    x = jax.random.normal(key, (2, 4, 16, 16), dtype=jnp.float32)
    target_shape = (4, 256)

    y = pallas_reshape(x, target_shape)          # Pallas copy path
    jax.block_until_ready(y)
    y_ref = x.reshape((x.shape[0],) + target_shape)
    assert y.shape == (2, 4, 256)
    assert y.dtype == x.dtype
    assert bool(jnp.array_equal(y, y_ref))

    # Second small case exercising the ragged (pad-and-slice) path:
    # element count per sample not a multiple of 8*128.
    x2 = jax.random.normal(jax.random.PRNGKey(1), (2, 3, 5, 7), dtype=jnp.float32)
    y2 = pallas_reshape(x2, (105,))
    jax.block_until_ready(y2)
    assert bool(jnp.array_equal(y2, x2.reshape(2, 105)))

    # Zero-cost metadata path sanity check.
    y3 = pallas_reshape(x, target_shape, materialize=False)
    assert bool(jnp.array_equal(y3, y_ref))

    print("KERNEL_OK")
</pallas_src>

<mosaic_0001>
module attributes {stable_mosaic.version = 11 : i64} {
  func.func @_copy_kernel(%arg0: i32, %arg1: memref<8x256xf32, #tpu.memory_space<vmem>>, %arg2: memref<8x256xf32, #tpu.memory_space<vmem>>) attributes {dimension_semantics = [#tpu.dimension_semantics<parallel>], iteration_bounds = array<i64: 1>, scalar_prefetch = 0 : i64, scratch_operands = 0 : i64, tpu.core_type = #tpu.core_type<tc>, window_params = [{transform_indices = @transform_0, window_bounds = array<i64: 8, 256>}, {transform_indices = @transform_1, window_bounds = array<i64: 8, 256>}]} {
    %c0 = arith.constant 0 : index
    %c0_0 = arith.constant 0 : index
    %0 = vector.load %arg1[%c0, %c0_0] : memref<8x256xf32, #tpu.memory_space<vmem>>, vector<8x256xf32>
    %c0_1 = arith.constant 0 : index
    %c0_2 = arith.constant 0 : index
    %1 = vector.load %arg2[%c0_1, %c0_2] : memref<8x256xf32, #tpu.memory_space<vmem>>, vector<8x256xf32>
    tpu.vector_store %arg2[%c0_1, %c0_2], %0 {strides = array<i32>} : memref<8x256xf32, #tpu.memory_space<vmem>>, vector<8x256xf32>,
    return
  }
  func.func @transform_0(%arg0: i32) -> (i32, i32) {
    %c0_i32 = arith.constant 0 : i32
    %c0_i32_0 = arith.constant 0 : i32
    return %arg0, %c0_i32 : i32, i32
  }
  func.func @transform_1(%arg0: i32) -> (i32, i32) {
    %c0_i32 = arith.constant 0 : i32
    %c0_i32_0 = arith.constant 0 : i32
    return %arg0, %c0_i32 : i32, i32
  }
}

</mosaic_0001>

<llo_original>
// kernel: tpu_custom_call.1
$region0: #{tpu_custom_call.1}
  #allocation0 [shape = 'u32[]', space=smem, size = 0x4, offset = 0x4, fixed_abs, tag = 'smem constant byte address 0x4 - core index']
  #allocation1 [shape = 'u32[144,128]{1,0:T(1,128)}', space=vmem, size = 0x12000, scoped, tag = 'internal scratch']
  %s0 = inlined_call_operand.hbm [shape: f32[8,256], index: 0, kind: input, shape index: {}]
  %s1 = inlined_call_operand.hbm [shape: f32[8,256], index: 1, kind: output, shape index: {}]
  %s2 = sld [smem:[#allocation0]]
  $region18: #{tpu_custom_call.1} parent=0
    _
  %s4 = ssub.s32 1, %s2
  %s5 = scalar_select 0, %s4, %s2
  $region1: #{tpu_custom_call.1} parent=0
    #allocation2 [shape = 'u8[8192]{0}', space=vmem, size = 0x2000, scoped, tag = 'input window, operand 0, single buffered']
    #allocation3 [shape = 's32[1]{0}', space=sflag, size = 0x4, scoped, tag = 'scoped memory for tpu_custom_call.1']
    #allocation4 [shape = 's32[1]{0}', space=sflag, size = 0x4, scoped, tag = 'scoped memory for tpu_custom_call.1']
    #allocation5 [shape = 'u8[8192]{0}', space=vmem, size = 0x2000, scoped, tag = 'output window, operand 0, single buffered']
    %6 = vsyncpa [#allocation3], 0
    %7 = vsyncpa [#allocation4], 0
    // Predicated region
    $region2: #{tpu_custom_call.1} parent=1 // pred_check
      _
    $region3: #{tpu_custom_call.1} parent=1 // pred_check_branch
      %9 = sbr.rel (0) target = $region5
    $region4: #{tpu_custom_call.1} parent=1 // pred_region
      %s11 = ssub.s32 256, 256
      %12 = vsyncadd [#allocation3], %s11
      %s14 = sshll.u32 [#allocation2], 4
      %s15 = int_to_ptr.vmem [resolvable:$true] %s14
      %17 = dma.hbm_to_vmem [thread:$0]  %s0, 256, %s15, [#allocation3]
    $region5: #{tpu_custom_call.1} parent=1 // pred_fallthru
      _
    // Predicated region
    $region6: #{tpu_custom_call.1} parent=1 // pred_check
      _
    $region7: #{tpu_custom_call.1} parent=1 // pred_check_branch
      %19 = sbr.rel (0) target = $region9
    $region8: #{tpu_custom_call.1} parent=1 // pred_region
      %20 = dma.done [#allocation3], 256
    $region9: #{tpu_custom_call.1} parent=1 // pred_fallthru
      _
    %v21 = vld [vmem:[#allocation2] sm:$0xff]
    %v22 = vld [vmem:[#allocation2 + $0x8] sm:$0xff]
    %23 = vst [vmem:[#allocation5] sm:$0xff] %v21
    %24 = vst [vmem:[#allocation5 + $0x8] sm:$0xff] %v22
    // Predicated region
    $region10: #{tpu_custom_call.1} parent=1 // pred_check
      _
    $region11: #{tpu_custom_call.1} parent=1 // pred_check_branch
      %26 = sbr.rel (0) target = $region13
    $region12: #{tpu_custom_call.1} parent=1 // pred_region
      %s28 = ssub.s32 256, 256
      %29 = vsyncadd [#allocation4], %s28
      %s31 = sshll.u32 [#allocation5], 4
      %s32 = int_to_ptr.vmem [resolvable:$true] %s31
      %34 = dma.vmem_to_hbm [thread:$0]  %s32, 256, %s1, [#allocation4]
    $region13: #{tpu_custom_call.1} parent=1 // pred_fallthru
      _
    // Predicated region
    $region14: #{tpu_custom_call.1} parent=1 // pred_check
      _
    $region15: #{tpu_custom_call.1} parent=1 // pred_check_branch
      %36 = sbr.rel (0) target = $region17
    $region16: #{tpu_custom_call.1} parent=1 // pred_region
      %37 = dma.done [#allocation4], 256
    $region17: #{tpu_custom_call.1} parent=1 // pred_fallthru
      _
    %38 = vsyncpa [#allocation3], 1
    %39 = vsyncpa [#allocation4], 1

</llo_original>
